<compile_context>
chip_gen: v5e
topology: v5e:2x2
jax: 0.10.0
libtpu: 0.0.40
codegen_flags: <defaults>
</compile_context>

<pallas_src>
import jax
import jax.numpy as jnp
from jax.experimental import pallas as pl
from jax.experimental.pallas import tpu as pltpu


LANES = 128
SUBLANES = 8


def _round_up(x: int, m: int) -> int:
    return ((x + m - 1) // m) * m


# ---------------------------------------------------------------------------
# 1) Plain forward:  score = user_emb * item_emb   (lane-dense, pipelined)
# ---------------------------------------------------------------------------
def _mul_kernel(u_ref, i_ref, o_ref):
    # Elementwise multiply on the VPU; one unmasked (TR, 128) store per tile.
    o_ref[...] = u_ref[...] * i_ref[...]


def bprmf_forward(user_emb: jax.Array, item_emb: jax.Array, *, tile_rows: int = 512) -> jax.Array:
    """Pallas implementation of BPRMF.forward: torch.mul(user_emb, item_emb).

    The multiply is purely elementwise, so we flatten to 1-D, pad to a multiple
    of (SUBLANES * LANES), and reshape to (rows, 128) so every vector load /
    store is lane-dense and (8, 128)-aligned.
    """
    assert user_emb.shape == item_emb.shape
    B, E = user_emb.shape
    dtype = user_emb.dtype
    N = B * E

    rows = pl.cdiv(N, LANES)
    TR = min(tile_rows, _round_up(rows, SUBLANES))
    TR = _round_up(TR, SUBLANES)
    rows_pad = _round_up(rows, TR)
    N_pad = rows_pad * LANES

    def _prep(x):
        flat = x.reshape(-1)
        if N_pad != N:
            flat = jnp.pad(flat, (0, N_pad - N))
        return flat.reshape(rows_pad, LANES)

    u2d = _prep(user_emb)
    i2d = _prep(item_emb)

    out2d = pl.pallas_call(
        _mul_kernel,
        out_shape=jax.ShapeDtypeStruct((rows_pad, LANES), dtype),
        grid_spec=pl.GridSpec(
            grid=(rows_pad // TR,),
            in_specs=[
                pl.BlockSpec((TR, LANES), lambda i: (i, 0)),
                pl.BlockSpec((TR, LANES), lambda i: (i, 0)),
            ],
            out_specs=pl.BlockSpec((TR, LANES), lambda i: (i, 0)),
        ),
        compiler_params=pltpu.CompilerParams(
            dimension_semantics=("parallel",),
        ),
    )(u2d, i2d)

    return out2d.reshape(-1)[:N].reshape(B, E)


# ---------------------------------------------------------------------------
# 2) Fused gather + multiply:  score = user_tbl[users] * item_tbl[items]
# ---------------------------------------------------------------------------
def _fused_gather_mul_kernel(
    users_ref, items_ref,          # SMEM scalar-prefetch index arrays
    user_tbl_ref, item_tbl_ref,    # HBM (memory_space=pl.ANY) embedding tables
    o_ref,                         # VMEM output tile (TB, E)
    u_buf, i_buf, sem,             # scratch: VMEM row buffers + DMA semaphores
):
    TB = o_ref.shape[0]
    base = pl.program_id(0) * TB

    # Issue all per-row gather DMAs for this batch tile (HBM row -> VMEM row),
    # then wait; issuing everything first lets the row fetches overlap.
    for r in range(TB):
        u = users_ref[base + r]
        it = items_ref[base + r]
        pltpu.make_async_copy(user_tbl_ref.at[u], u_buf.at[r], sem.at[0, r]).start()
        pltpu.make_async_copy(item_tbl_ref.at[it], i_buf.at[r], sem.at[1, r]).start()

    for r in range(TB):
        pltpu.make_async_copy(user_tbl_ref.at[0], u_buf.at[r], sem.at[0, r]).wait()
        pltpu.make_async_copy(item_tbl_ref.at[0], i_buf.at[r], sem.at[1, r]).wait()

    # VPU elementwise multiply; single (TB, E) store per tile.
    o_ref[...] = u_buf[...] * i_buf[...]


def bprmf_score_fused(
    user_table: jax.Array,
    item_table: jax.Array,
    users: jax.Array,
    items: jax.Array,
    *,
    tile_b: int = 8,
) -> jax.Array:
    """Fused get_embedding + forward: no HBM round trip for gathered rows."""
    B = users.shape[0]
    E = user_table.shape[1]
    assert item_table.shape[1] == E

    TB = min(tile_b, _round_up(B, SUBLANES))
    TB = _round_up(TB, SUBLANES)
    B_pad = _round_up(B, TB)
    # Pad index arrays with a valid index (0); padded output rows are sliced off.
    users_p = jnp.zeros((B_pad,), jnp.int32).at[:B].set(users.astype(jnp.int32))
    items_p = jnp.zeros((B_pad,), jnp.int32).at[:B].set(items.astype(jnp.int32))

    out = pl.pallas_call(
        _fused_gather_mul_kernel,
        out_shape=jax.ShapeDtypeStruct((B_pad, E), user_table.dtype),
        grid_spec=pltpu.PrefetchScalarGridSpec(
            num_scalar_prefetch=2,                   # users_p, items_p -> SMEM
            grid=(B_pad // TB,),
            in_specs=[
                pl.BlockSpec(memory_space=pl.ANY),   # user table stays in HBM
                pl.BlockSpec(memory_space=pl.ANY),   # item table stays in HBM
            ],
            out_specs=pl.BlockSpec((TB, E), lambda t, u_idx, i_idx: (t, 0)),
            scratch_shapes=[
                pltpu.VMEM((TB, E), user_table.dtype),
                pltpu.VMEM((TB, E), item_table.dtype),
                pltpu.SemaphoreType.DMA((2, TB)),
            ],
        ),
        compiler_params=pltpu.CompilerParams(
            dimension_semantics=("parallel",),
        ),
    )(users_p, items_p, user_table, item_table)
    return out[:B]


# ---------------------------------------------------------------------------
# Minimal JAX/Pallas port of the PyTorch BPRMF module.
# ---------------------------------------------------------------------------
class BPRMFPallas:
    def __init__(self, n_users: int, n_items: int, emb_size: int, key):
        ku, ki = jax.random.split(key)
        # nn.init.normal_(std=0.1) equivalents, deterministic from `key`.
        self.user_embeddings = 0.1 * jax.random.normal(
            ku, (n_users, emb_size), dtype=jnp.float32)
        self.item_embeddings = 0.1 * jax.random.normal(
            ki, (n_items, emb_size), dtype=jnp.float32)

    def get_embedding(self, users, pos_items, neg_items):
        # Pure gather glue (same semantics as the PyTorch module; ego == lookup).
        u_emb = self.user_embeddings[users]
        pos_emb = self.item_embeddings[pos_items]
        neg_emb = self.item_embeddings[neg_items]
        return u_emb, pos_emb, neg_emb, u_emb, pos_emb, neg_emb

    def forward(self, user_emb, item_emb):
        # Literal module forward: torch.mul(user_emb, item_emb).
        return bprmf_forward(user_emb, item_emb)

    def score_fused(self, users, items):
        # Perf path: gather + multiply in one kernel (same math as
        # forward(user_embeddings[users], item_embeddings[items])).
        return bprmf_score_fused(self.user_embeddings, self.item_embeddings, users, items)


if __name__ == "__main__":
    key = jax.random.PRNGKey(0)
    k_model, k_u, k_p, k_n = jax.random.split(key, 4)

    n_users, n_items, emb_size, batch = 64, 128, 32, 8
    model = BPRMFPallas(n_users, n_items, emb_size, k_model)

    users = jax.random.randint(k_u, (batch,), 0, n_users)
    pos_items = jax.random.randint(k_p, (batch,), 0, n_items)
    neg_items = jax.random.randint(k_n, (batch,), 0, n_items)

    u_emb, pos_emb, neg_emb, *_ = model.get_embedding(users, pos_items, neg_items)
    ref = u_emb * pos_emb

    # 1) Plain forward (lane-dense elementwise-multiply kernel), matches torch.mul.
    score = jax.block_until_ready(model.forward(u_emb, pos_emb))
    assert score.shape == (batch, emb_size)
    assert jnp.allclose(score, ref, atol=1e-6), "forward mismatch vs reference"

    # 2) Fused gather + multiply kernel (the optimized path).
    score_fused = jax.block_until_ready(model.score_fused(users, pos_items))
    assert score_fused.shape == (batch, emb_size)
    assert jnp.allclose(score_fused, ref, atol=1e-6), "fused mismatch vs reference"

    # Also check the negative-item path goes through the same machinery.
    neg_ref = u_emb * neg_emb
    neg_score = jax.block_until_ready(model.forward(u_emb, neg_emb))
    assert jnp.allclose(neg_score, neg_ref, atol=1e-6), "neg forward mismatch"

    print("KERNEL_OK")
</pallas_src>

<mosaic_0001>
module attributes {stable_mosaic.version = 11 : i64} {
  func.func @_mul_kernel(%arg0: i32, %arg1: memref<8x128xf32, #tpu.memory_space<vmem>>, %arg2: memref<8x128xf32, #tpu.memory_space<vmem>>, %arg3: memref<8x128xf32, #tpu.memory_space<vmem>>) attributes {dimension_semantics = [#tpu.dimension_semantics<parallel>], iteration_bounds = array<i64: 1>, scalar_prefetch = 0 : i64, scratch_operands = 0 : i64, tpu.core_type = #tpu.core_type<tc>, window_params = [{transform_indices = @transform_0, window_bounds = array<i64: 8, 128>}, {transform_indices = @transform_1, window_bounds = array<i64: 8, 128>}, {transform_indices = @transform_2, window_bounds = array<i64: 8, 128>}]} {
    %c0 = arith.constant 0 : index
    %c0_0 = arith.constant 0 : index
    %0 = vector.load %arg1[%c0, %c0_0] : memref<8x128xf32, #tpu.memory_space<vmem>>, vector<8x128xf32>
    %c0_1 = arith.constant 0 : index
    %c0_2 = arith.constant 0 : index
    %1 = vector.load %arg2[%c0_1, %c0_2] : memref<8x128xf32, #tpu.memory_space<vmem>>, vector<8x128xf32>
    %2 = arith.mulf %0, %1 : vector<8x128xf32>
    %c0_3 = arith.constant 0 : index
    %c0_4 = arith.constant 0 : index
    %3 = vector.load %arg3[%c0_3, %c0_4] : memref<8x128xf32, #tpu.memory_space<vmem>>, vector<8x128xf32>
    tpu.vector_store %arg3[%c0_3, %c0_4], %2 {strides = array<i32>} : memref<8x128xf32, #tpu.memory_space<vmem>>, vector<8x128xf32>,
    return
  }
  func.func @transform_0(%arg0: i32) -> (i32, i32) {
    %c0_i32 = arith.constant 0 : i32
    %c0_i32_0 = arith.constant 0 : i32
    return %arg0, %c0_i32 : i32, i32
  }
  func.func @transform_1(%arg0: i32) -> (i32, i32) {
    %c0_i32 = arith.constant 0 : i32
    %c0_i32_0 = arith.constant 0 : i32
    return %arg0, %c0_i32 : i32, i32
  }
  func.func @transform_2(%arg0: i32) -> (i32, i32) {
    %c0_i32 = arith.constant 0 : i32
    %c0_i32_0 = arith.constant 0 : i32
    return %arg0, %c0_i32 : i32, i32
  }
}

</mosaic_0001>

<llo_original>
// kernel: tpu_custom_call.1
$region0: #{tpu_custom_call.1}
  #allocation0 [shape = 'u32[]', space=smem, size = 0x4, offset = 0x4, fixed_abs, tag = 'smem constant byte address 0x4 - core index']
  #allocation1 [shape = 'u32[72,128]{1,0:T(1,128)}', space=vmem, size = 0x9000, scoped, tag = 'internal scratch']
  %s0 = inlined_call_operand.hbm [shape: f32[8,128], index: 0, kind: input, shape index: {}]
  %s1 = inlined_call_operand.hbm [shape: f32[8,128], index: 1, kind: input, shape index: {}]
  %s2 = inlined_call_operand.hbm [shape: f32[8,128], index: 2, kind: output, shape index: {}]
  %s3 = sld [smem:[#allocation0]]
  $region26: #{tpu_custom_call.1} parent=0
    _
  %s5 = ssub.s32 1, %s3
  %s6 = scalar_select 0, %s5, %s3
  $region1: #{tpu_custom_call.1} parent=0
    #allocation2 [shape = 'u8[4096]{0}', space=vmem, size = 0x1000, scoped, tag = 'input window, operand 0, single buffered']
    #allocation3 [shape = 's32[1]{0}', space=sflag, size = 0x4, scoped, tag = 'scoped memory for tpu_custom_call.1']
    #allocation4 [shape = 's32[1]{0}', space=sflag, size = 0x4, scoped, tag = 'scoped memory for tpu_custom_call.1']
    #allocation5 [shape = 'u8[4096]{0}', space=vmem, size = 0x1000, scoped, tag = 'input window, operand 1, single buffered']
    #allocation6 [shape = 's32[1]{0}', space=sflag, size = 0x4, scoped, tag = 'scoped memory for tpu_custom_call.1']
    #allocation7 [shape = 'u8[4096]{0}', space=vmem, size = 0x1000, scoped, tag = 'output window, operand 0, single buffered']
    %7 = vsyncpa [#allocation3], 0
    %8 = vsyncpa [#allocation6], 0
    %9 = vsyncpa [#allocation4], 0
    // Predicated region
    $region2: #{tpu_custom_call.1} parent=1 // pred_check
      _
    $region3: #{tpu_custom_call.1} parent=1 // pred_check_branch
      %11 = sbr.rel (0) target = $region5
    $region4: #{tpu_custom_call.1} parent=1 // pred_region
      %13 = vsyncadd [#allocation3], 0
      %s15 = sshll.u32 %s0, 4
      %s16 = int_to_ptr.hbm [resolvable:$true] %s15
      %s17 = sshll.u32 [#allocation2], 4
      %s18 = int_to_ptr.vmem [resolvable:$true] %s17
      %20 = dma.hbm_to_vmem [thread:$0]  %s16, 128, %s18, [#allocation3]
    $region5: #{tpu_custom_call.1} parent=1 // pred_fallthru
      _
    // Predicated region
    $region6: #{tpu_custom_call.1} parent=1 // pred_check
      _
    $region7: #{tpu_custom_call.1} parent=1 // pred_check_branch
      %22 = sbr.rel (0) target = $region9
    $region8: #{tpu_custom_call.1} parent=1 // pred_region
      %24 = vsyncadd [#allocation6], 0
      %s26 = sshll.u32 %s1, 4
      %s27 = int_to_ptr.hbm [resolvable:$true] %s26
      %s28 = sshll.u32 [#allocation5], 4
      %s29 = int_to_ptr.vmem [resolvable:$true] %s28
      %31 = dma.hbm_to_vmem [thread:$0]  %s27, 128, %s29, [#allocation6]
    $region9: #{tpu_custom_call.1} parent=1 // pred_fallthru
      _
    // Predicated region
    $region10: #{tpu_custom_call.1} parent=1 // pred_check
      _
    $region11: #{tpu_custom_call.1} parent=1 // pred_check_branch
      %33 = sbr.rel (0) target = $region13
    $region12: #{tpu_custom_call.1} parent=1 // pred_region
      %35 = dma.done [#allocation3], 128
    $region13: #{tpu_custom_call.1} parent=1 // pred_fallthru
      _
    // Predicated region
    $region14: #{tpu_custom_call.1} parent=1 // pred_check
      _
    $region15: #{tpu_custom_call.1} parent=1 // pred_check_branch
      %37 = sbr.rel (0) target = $region17
    $region16: #{tpu_custom_call.1} parent=1 // pred_region
      %39 = dma.done [#allocation6], 128
    $region17: #{tpu_custom_call.1} parent=1 // pred_fallthru
      _
    %v40 = vld [vmem:[#allocation2] sm:$0xff]
    %v41 = vld [vmem:[#allocation5] sm:$0xff]
    %v42 = vmul.f32 %v40, %v41
    %43 = vst [vmem:[#allocation7] sm:$0xff] %v42
    // Predicated region
    $region18: #{tpu_custom_call.1} parent=1 // pred_check
      _
    $region19: #{tpu_custom_call.1} parent=1 // pred_check_branch
      %45 = sbr.rel (0) target = $region21
    $region20: #{tpu_custom_call.1} parent=1 // pred_region
      %47 = vsyncadd [#allocation4], 0
      %s49 = sshll.u32 [#allocation7], 4
      %s50 = int_to_ptr.vmem [resolvable:$true] %s49
      %s51 = sshll.u32 %s2, 4
      %s52 = int_to_ptr.hbm [resolvable:$true] %s51
      %54 = dma.vmem_to_hbm [thread:$0]  %s50, 128, %s52, [#allocation4]
    $region21: #{tpu_custom_call.1} parent=1 // pred_fallthru
      _
    // Predicated region
    $region22: #{tpu_custom_call.1} parent=1 // pred_check
      _
    $region23: #{tpu_custom_call.1} parent=1 // pred_check_branch
      %56 = sbr.rel (0) target = $region25
    $region24: #{tpu_custom_call.1} parent=1 // pred_region
      %58 = dma.done [#allocation4], 128
    $region25: #{tpu_custom_call.1} parent=1 // pred_fallthru
      _
    %59 = vsyncpa [#allocation3], 1
    %60 = vsyncpa [#allocation6], 1
    %61 = vsyncpa [#allocation4], 1

</llo_original>
